<compile_context>
chip_gen: v7x
topology: tpu7x:2x2x1
jax: 0.10.0
libtpu: 0.0.40
codegen_flags: <defaults>
</compile_context>

<pallas_src>
import functools

import jax
import jax.numpy as jnp
from jax.experimental import pallas as pl
from jax.experimental.pallas import tpu as pltpu


# ----------------------------- tiling helpers --------------------------------

def _round_up(x, m):
    return (x + m - 1) // m * m


def _tpu_vmem_capacity_bytes():
    try:
        return int(pltpu.get_tpu_info().vmem_capacity_bytes)
    except Exception:
        return 64 * 1024 * 1024          # v7x-safe fallback


def _largest_divisor_leq(n, cap):
    cap = max(1, min(n, cap))
    for d in range(cap, 0, -1):
        if n % d == 0:
            return d
    return 1


def _choose_tiling(b, c, hw, in_itemsize, out_itemsize):
    """Pick (b_tile, tile_n, hw_padded, vmem_limit_bytes) from chip VMEM."""
    vmem_cap = _tpu_vmem_capacity_bytes()
    # Leave headroom for Mosaic internals: ~48 MiB on v7x, ~96 MiB on v5e/v6e.
    vmem_limit = min(vmem_cap * 3 // 4, 96 * 1024 * 1024)

    # Worst-case resident bytes per tile element (whiten pass): double-buffered
    # input + output at native dtype plus two f32 temporaries.
    per_elem = 2 * in_itemsize + 2 * out_itemsize + 8
    max_elems = max(c * 128, (vmem_limit // 2) // per_elem)
    # Target ~4 MiB of input per grid step (amortizes ~0.35us step overhead),
    # capped by what fits in VMEM.
    target_elems = min(max_elems, (4 * 1024 * 1024) // in_itemsize)

    np128 = _round_up(hw, 128)
    tile_n = min(np128, max(128, (target_elems // max(c, 1)) // 128 * 128))
    hw_padded = _round_up(hw, tile_n)
    n_sp_tiles = hw_padded // tile_n

    bt_cap = max(1, target_elems // (c * tile_n))
    if b >= 2 and n_sp_tiles == 1 and c * tile_n * in_itemsize >= (1 << 19):
        # A single image already moves >=512 KiB per step: keep >= 2 batch
        # chunks so the parallel axis can shard across both v7x TensorCores.
        bt_cap = min(bt_cap, b // 2)
    b_tile = _largest_divisor_leq(b, bt_cap)
    return b_tile, tile_n, hw_padded, vmem_limit


# ----------------------------- kernels ---------------------------------------

def _stats_kernel(x_ref, sum_ref, gram_ref):
    """Per-batch-chunk partial sum(x) [C,1] and Gram x x^T [C,C]."""
    @pl.when(pl.program_id(1) == 0)
    def _():
        sum_ref[...] = jnp.zeros_like(sum_ref)
        gram_ref[...] = jnp.zeros_like(gram_ref)

    x = x_ref[...]                                           # (bt, C, tn) native dtype
    xs = jnp.sum(x, axis=0, dtype=jnp.float32)               # (C, tn) f32 accumulate
    sum_ref[...] += jnp.sum(xs, axis=-1, keepdims=True)      # (C, 1)
    # Batched Gram contracting the lane axis (same pattern as attention scores).
    g = jnp.einsum('bct,bdt->bcd', x, x,
                   preferred_element_type=jnp.float32)       # (bt, C, C)
    gram_ref[...] += jnp.sum(g, axis=0)


def _whiten_kernel(x_ref, w_ref, beta_ref, o_ref, *, c, use_vpu):
    """y = W' x + beta'  (mean and gamma pre-folded into W', beta')."""
    x = x_ref[...]                                           # (bt, C, tn)
    w = w_ref[...]                                           # (C, C) f32
    beta = beta_ref[...]                                     # (C, 1) f32
    if use_vpu:
        # C lane-parallel broadcast-FMAs; a (C,C)@(C,tn) MXU contraction with
        # K=C<=8 is mostly idle and the VALU work hides under the HBM DMA.
        y = w[:, 0:1][None] * x[:, 0:1, :].astype(jnp.float32)
        for k in range(1, c):
            y = y + w[:, k:k + 1][None] * x[:, k:k + 1, :].astype(jnp.float32)
        o_ref[...] = (y + beta).astype(o_ref.dtype)
    else:
        # Per-image MXU dot (static loop over the small batch tile); avoids any
        # relayout a broadcast-batched einsum could introduce.
        for i in range(x.shape[0]):
            yi = jnp.dot(w, x[i], preferred_element_type=jnp.float32)
            o_ref[i] = (yi + beta).astype(o_ref.dtype)


# ----------------------------- pallas_call wrappers --------------------------

def _batch_stats(x3d, b_tile, tile_n, vmem_limit):
    b, c, n = x3d.shape
    nb = b // b_tile
    return pl.pallas_call(
        _stats_kernel,
        out_shape=(jax.ShapeDtypeStruct((nb, c, 1), jnp.float32),
                   jax.ShapeDtypeStruct((nb, c, c), jnp.float32)),
        grid_spec=pltpu.PrefetchScalarGridSpec(
            num_scalar_prefetch=0,
            grid=(nb, n // tile_n),
            in_specs=[pl.BlockSpec((b_tile, c, tile_n),
                                   lambda i, j: (i, 0, j))],
            out_specs=(pl.BlockSpec((None, c, 1), lambda i, j: (i, 0, 0)),
                       pl.BlockSpec((None, c, c), lambda i, j: (i, 0, 0))),
        ),
        compiler_params=pltpu.CompilerParams(
            dimension_semantics=("parallel", "arbitrary"),
            vmem_limit_bytes=vmem_limit),
    )(x3d)


def _whiten_apply(x3d, w_eff, beta_eff, b_tile, tile_n, vmem_limit):
    b, c, n = x3d.shape
    use_vpu = c <= 8   # conservative cutoff: VALU loop stays hidden on all gens
    return pl.pallas_call(
        functools.partial(_whiten_kernel, c=c, use_vpu=use_vpu),
        out_shape=jax.ShapeDtypeStruct((b, c, n), x3d.dtype),
        grid_spec=pltpu.PrefetchScalarGridSpec(
            num_scalar_prefetch=0,
            grid=(b // b_tile, n // tile_n),
            in_specs=[
                pl.BlockSpec((b_tile, c, tile_n), lambda i, j: (i, 0, j)),
                pl.BlockSpec((c, c), lambda i, j: (0, 0)),
                pl.BlockSpec((c, 1), lambda i, j: (0, 0)),
            ],
            out_specs=pl.BlockSpec((b_tile, c, tile_n),
                                   lambda i, j: (i, 0, j)),
        ),
        compiler_params=pltpu.CompilerParams(
            dimension_semantics=("parallel", "parallel"),
            vmem_limit_bytes=vmem_limit),
    )(x3d, w_eff, beta_eff)


# ----------------------------- forward ---------------------------------------

def cholesky_whitening_forward(x, weight, bias, eps=1e-5, mode="ZCA"):
    """Forward pass matching CholeskyWhitening (training-mode batch stats)."""
    orig_shape = x.shape
    if x.ndim == 4:
        b, c, h, w = x.shape
        x3d = x.reshape(b, c, h * w)                # pure reshape, no transpose
        n_rows = h * w
    elif x.ndim == 2:
        # TODO(synk): run the 2D path in its native [N, C] layout (channels on
        # lanes) to avoid this wrapper-side HBM transpose pass.
        n_rows, c = x.shape
        b = 1
        x3d = x.T.reshape(1, c, n_rows)
    else:
        raise ValueError("Input must be 2D or 4D")

    n_total = b * n_rows
    itemsize = x.dtype.itemsize
    b_tile, tile_n, n_padded, vmem_limit = _choose_tiling(
        b, c, n_rows, itemsize, itemsize)

    if n_padded != n_rows:
        # Zero padding is exact for sum/Gram; padded lanes are sliced off the
        # whitened output below.  Keeps every tile 128-lane aligned.
        x3d = jnp.pad(x3d, ((0, 0), (0, 0), (0, n_padded - n_rows)))

    # 1) fused mean / Gram statistics -- single HBM sweep over x.
    sums, grams = _batch_stats(x3d, b_tile, tile_n, vmem_limit)
    sum_total = jnp.sum(sums, axis=0)                         # (C, 1)
    gram_total = jnp.sum(grams, axis=0)                       # (C, C)
    nf = jnp.float32(n_total)
    mean = sum_total / nf                                     # (C, 1)
    # TODO(synk): raw-moment covariance (G - N*mu*mu^T)/(N-1) loses precision
    # vs centering first when |mean| >> std; eps regularization covers the
    # typical case.  Guard the N == 1 degenerate divide.
    denom = jnp.float32(max(n_total - 1, 1))
    cov = (gram_total - nf * (mean @ mean.T)) / denom

    # 2) whitening matrix -- tiny CxC factorization, plain JAX (no Pallas eqv.)
    reg_cov = cov + eps * jnp.eye(c, dtype=jnp.float32)
    if mode.upper() == "ZCA":
        eigenvals, eigenvecs = jnp.linalg.eigh(reg_cov)
        eigenvals = jnp.maximum(eigenvals, eps)
        wmat = (eigenvecs * (1.0 / jnp.sqrt(eigenvals))[None, :]) @ eigenvecs.T
    else:
        # Matches the torch reference's non-exception path for mode != 'ZCA':
        # solve_triangular(I, L, upper=False) solves I @ X = L, i.e. X = L.
        wmat = jnp.linalg.cholesky(reg_cov)

    gamma = weight.reshape(c, 1).astype(jnp.float32)
    beta = bias.reshape(c, 1).astype(jnp.float32)
    # Fold affine scale and the mean into the matrix: y = W' x + beta'.
    w_eff = gamma * wmat.astype(jnp.float32)                  # (C, C)
    beta_eff = beta - w_eff @ mean                            # (C, 1)

    # 3) whitening + affine -- second HBM sweep, lane-dense unmasked stores.
    y3d = _whiten_apply(x3d, w_eff, beta_eff, b_tile, tile_n, vmem_limit)
    if n_padded != n_rows:
        y3d = y3d[:, :, :n_rows]

    if len(orig_shape) == 4:
        return y3d.reshape(orig_shape)                        # pure reshape
    return y3d[0].T


# ----------------------------- main -------------------------------------------

if __name__ == "__main__":
    key = jax.random.PRNGKey(0)
    B, C, H, W = 2, 4, 16, 16        # num_features = C = 4

    x = jax.random.normal(key, (B, C, H, W), dtype=jnp.float32)

    # deterministic parameter init (matches nn.init.ones_/zeros_)
    weight = jnp.ones((C,), dtype=jnp.float32)
    bias = jnp.zeros((C,), dtype=jnp.float32)

    y = cholesky_whitening_forward(x, weight, bias, eps=1e-5, mode="ZCA")
    y = jax.block_until_ready(y)

    assert y.shape == x.shape and y.dtype == x.dtype
    assert bool(jnp.all(jnp.isfinite(y)))

    # lightweight check against a plain-JAX transcription of the torch forward
    def _ref(x, weight, bias, eps):
        b, c, h, w = x.shape
        x2d = jnp.transpose(x, (0, 2, 3, 1)).reshape(-1, c).astype(jnp.float32)
        mu = x2d.mean(axis=0)
        xc = x2d - mu
        cov = xc.T @ xc / (x2d.shape[0] - 1)
        reg = cov + eps * jnp.eye(c, dtype=jnp.float32)
        ev, evec = jnp.linalg.eigh(reg)
        ev = jnp.maximum(ev, eps)
        wm = evec @ jnp.diag(1.0 / jnp.sqrt(ev)) @ evec.T
        y2d = (xc @ wm.T) * weight + bias
        return y2d.reshape(b, h, w, c).transpose(0, 3, 1, 2)

    y_ref = _ref(x, weight, bias, 1e-5)
    assert bool(jnp.allclose(y, y_ref, atol=2e-3, rtol=2e-3))
    print("KERNEL_OK")
</pallas_src>

<mosaic_0001>
module attributes {stable_mosaic.version = 11 : i64} {
  func.func @_stats_kernel(%arg0: i32, %arg1: i32, %arg2: memref<2x4x256xf32, #tpu.memory_space<vmem>>, %arg3: memref<1x4x1xf32, #tpu.memory_space<vmem>>, %arg4: memref<1x4x4xf32, #tpu.memory_space<vmem>>) attributes {dimension_semantics = [#tpu.dimension_semantics<parallel>, #tpu.dimension_semantics<arbitrary>], iteration_bounds = array<i64: 1, 1>, scalar_prefetch = 0 : i64, scratch_operands = 0 : i64, tpu.core_type = #tpu.core_type<tc>, window_params = [{transform_indices = @transform_0, window_bounds = array<i64: 2, 4, 256>}, {transform_indices = @transform_1, window_bounds = array<i64: 1, 4, 1>}, {transform_indices = @transform_2, window_bounds = array<i64: 1, 4, 4>}]} {
    %c0_i32 = arith.constant 0 : i32
    %0 = arith.cmpi eq, %arg1, %c0_i32 : i32
    %1 = arith.extui %0 : i1 to i32
    %c0_i32_0 = arith.constant 0 : i32
    %2 = arith.cmpi ne, %1, %c0_i32_0 : i32
    scf.if %2 {
      %cst_18 = arith.constant 0.000000e+00 : f32
      %21 = vector.broadcast %cst_18 : f32 to vector<4x1xf32>
      %c0_19 = arith.constant 0 : index
      %c0_20 = arith.constant 0 : index
      %c0_21 = arith.constant 0 : index
      %22 = vector.load %arg3[%c0_19, %c0_20, %c0_21] : memref<1x4x1xf32, #tpu.memory_space<vmem>>, vector<1x4x1xf32>
      %23 = vector.shape_cast %22 : vector<1x4x1xf32> to vector<4x1xf32>
      %24 = vector.shape_cast %21 : vector<4x1xf32> to vector<1x4x1xf32>
      tpu.vector_store %arg3[%c0_19, %c0_20, %c0_21], %24 {strides = array<i32>} : memref<1x4x1xf32, #tpu.memory_space<vmem>>, vector<1x4x1xf32>,
      %cst_22 = arith.constant 0.000000e+00 : f32
      %25 = vector.broadcast %cst_22 : f32 to vector<4x4xf32>
      %c0_23 = arith.constant 0 : index
      %c0_24 = arith.constant 0 : index
      %c0_25 = arith.constant 0 : index
      %26 = vector.load %arg4[%c0_23, %c0_24, %c0_25] : memref<1x4x4xf32, #tpu.memory_space<vmem>>, vector<1x4x4xf32>
      %27 = vector.shape_cast %26 : vector<1x4x4xf32> to vector<4x4xf32>
      %28 = vector.shape_cast %25 : vector<4x4xf32> to vector<1x4x4xf32>
      tpu.vector_store %arg4[%c0_23, %c0_24, %c0_25], %28 {strides = array<i32>} : memref<1x4x4xf32, #tpu.memory_space<vmem>>, vector<1x4x4xf32>,
    } else {
    }
    %c0 = arith.constant 0 : index
    %c0_1 = arith.constant 0 : index
    %c0_2 = arith.constant 0 : index
    %3 = vector.load %arg2[%c0, %c0_1, %c0_2] : memref<2x4x256xf32, #tpu.memory_space<vmem>>, vector<2x4x256xf32>
    %cst = arith.constant dense<0.000000e+00> : vector<4x256xf32>
    %4 = vector.multi_reduction <add>, %3, %cst [0] : vector<2x4x256xf32> to vector<4x256xf32>
    %c0_3 = arith.constant 0 : index
    %c0_4 = arith.constant 0 : index
    %c0_5 = arith.constant 0 : index
    %5 = vector.load %arg3[%c0_3, %c0_4, %c0_5] : memref<1x4x1xf32, #tpu.memory_space<vmem>>, vector<1x4x1xf32>
    %6 = vector.shape_cast %5 : vector<1x4x1xf32> to vector<4x1xf32>
    %cst_6 = arith.constant dense<0.000000e+00> : vector<4xf32>
    %7 = vector.multi_reduction <add>, %4, %cst_6 [1] : vector<4x256xf32> to vector<4xf32>
    %8 = vector.shape_cast %7 : vector<4xf32> to vector<4x1xf32>
    %9 = arith.addf %6, %8 : vector<4x1xf32>
    %c0_7 = arith.constant 0 : index
    %c0_8 = arith.constant 0 : index
    %c0_9 = arith.constant 0 : index
    %10 = vector.load %arg3[%c0_7, %c0_8, %c0_9] : memref<1x4x1xf32, #tpu.memory_space<vmem>>, vector<1x4x1xf32>
    %11 = vector.shape_cast %10 : vector<1x4x1xf32> to vector<4x1xf32>
    %12 = vector.shape_cast %9 : vector<4x1xf32> to vector<1x4x1xf32>
    tpu.vector_store %arg3[%c0_7, %c0_8, %c0_9], %12 {strides = array<i32>} : memref<1x4x1xf32, #tpu.memory_space<vmem>>, vector<1x4x1xf32>,
    "tpu.trace_start"() <{level = 10 : i32, message = "bct,bdt->bcd"}> : () -> ()
    %cst_10 = arith.constant dense<0.000000e+00> : vector<2x4x4xf32>
    %13 = tpu.matmul %3, %3, %cst_10 {dimension_numbers = #tpu.dot_dimension_numbers<[2], [2], [1], [1], [0, 0, 0, 1, 1, 1], [0], [0]>} : vector<2x4x256xf32>, vector<2x4x256xf32>, vector<2x4x4xf32> -> vector<2x4x4xf32>
    "tpu.trace_stop"() : () -> ()
    %c0_11 = arith.constant 0 : index
    %c0_12 = arith.constant 0 : index
    %c0_13 = arith.constant 0 : index
    %14 = vector.load %arg4[%c0_11, %c0_12, %c0_13] : memref<1x4x4xf32, #tpu.memory_space<vmem>>, vector<1x4x4xf32>
    %15 = vector.shape_cast %14 : vector<1x4x4xf32> to vector<4x4xf32>
    %cst_14 = arith.constant dense<0.000000e+00> : vector<4x4xf32>
    %16 = vector.multi_reduction <add>, %13, %cst_14 [0] : vector<2x4x4xf32> to vector<4x4xf32>
    %17 = arith.addf %15, %16 : vector<4x4xf32>
    %c0_15 = arith.constant 0 : index
    %c0_16 = arith.constant 0 : index
    %c0_17 = arith.constant 0 : index
    %18 = vector.load %arg4[%c0_15, %c0_16, %c0_17] : memref<1x4x4xf32, #tpu.memory_space<vmem>>, vector<1x4x4xf32>
    %19 = vector.shape_cast %18 : vector<1x4x4xf32> to vector<4x4xf32>
    %20 = vector.shape_cast %17 : vector<4x4xf32> to vector<1x4x4xf32>
    tpu.vector_store %arg4[%c0_15, %c0_16, %c0_17], %20 {strides = array<i32>} : memref<1x4x4xf32, #tpu.memory_space<vmem>>, vector<1x4x4xf32>,
    return
  }
  func.func @transform_0(%arg0: i32, %arg1: i32) -> (i32, i32, i32) {
    %c0_i32 = arith.constant 0 : i32
    %c0_i32_0 = arith.constant 0 : i32
    return %arg0, %c0_i32, %arg1 : i32, i32, i32
  }
  func.func @transform_1(%arg0: i32, %arg1: i32) -> (i32, i32, i32) {
    %c0_i32 = arith.constant 0 : i32
    %c0_i32_0 = arith.constant 0 : i32
    %c0_i32_1 = arith.constant 0 : i32
    return %arg0, %c0_i32, %c0_i32_0 : i32, i32, i32
  }
  func.func @transform_2(%arg0: i32, %arg1: i32) -> (i32, i32, i32) {
    %c0_i32 = arith.constant 0 : i32
    %c0_i32_0 = arith.constant 0 : i32
    %c0_i32_1 = arith.constant 0 : i32
    return %arg0, %c0_i32, %c0_i32_0 : i32, i32, i32
  }
}

</mosaic_0001>

<llo_original>
// kernel: tpu_custom_call.1
$region0: #{tpu_custom_call.1}
  #allocation0 [shape = 'u32[]', space=smem, size = 0x4, offset = 0x4, fixed_abs, tag = 'smem constant byte address 0x4 - core index']
  #allocation1 [shape = 'u32[144,128]{1,0:T(1,128)}', space=vmem, size = 0x12000, scoped, tag = 'internal scratch']
  %s0 = inlined_call_operand.hbm [shape: f32[2,4,256], index: 0, kind: input, shape index: {}]
  %s1 = inlined_call_operand.vmem [shape: f32[1,4,1], index: 1, kind: output, shape index: {0}]
  %s2 = inlined_call_operand.hbm [shape: f32[1,4,4], index: 2, kind: output, shape index: {1}]
  %3 = xla_tuple %s1, %s2
  %s4 = sld [smem:[#allocation0]]
  $region30: #{tpu_custom_call.1} parent=0
    _
  %s6 = ssub.s32 1, %s4
  %s7 = scalar_select 0, %s6, %s4
  $region1: #{tpu_custom_call.1} parent=0
    #allocation2 [shape = 'u8[8192]{0}', space=vmem, size = 0x2000, scoped, tag = 'input window, operand 0, single buffered']
    #allocation3 [shape = 's32[1]{0}', space=sflag, size = 0x4, scoped, tag = 'scoped memory for tpu_custom_call.1']
    #allocation4 [shape = 's32[1]{0}', space=sflag, size = 0x4, scoped, tag = 'scoped memory for tpu_custom_call.1']
    #allocation5 [shape = 'u8[2048]{0}', space=vmem, size = 0x800, scoped, tag = 'output window, operand 1, single buffered']
    %8 = vsyncpa [#allocation3], 0
    %9 = vsyncpa [#allocation4], 0
    // Predicated region
    $region2: #{tpu_custom_call.1} parent=1 // pred_check
      _
    $region3: #{tpu_custom_call.1} parent=1 // pred_check_branch
      %11 = sbr.rel (0) target = $region5
    $region4: #{tpu_custom_call.1} parent=1 // pred_region
      %s13 = ssub.s32 256, 256
      %14 = vsyncadd [#allocation3], %s13
      %s15 = sshll.u32 [#allocation2], 4
      %s16 = int_to_ptr.vmem [resolvable:$true] %s15
      %21 = dma.hbm_to_vmem [thread:$0]  %s0, 256, %s16, [#allocation3], 128, 128, 8
    $region5: #{tpu_custom_call.1} parent=1 // pred_fallthru
      _
    // Predicated region
    $region6: #{tpu_custom_call.1} parent=1 // pred_check
      _
    $region7: #{tpu_custom_call.1} parent=1 // pred_check_branch
      %23 = sbr.rel (0) target = $region9
    $region8: #{tpu_custom_call.1} parent=1 // pred_region
      %24 = dma.done [#allocation3], 256
    $region9: #{tpu_custom_call.1} parent=1 // pred_fallthru
      _
    %p25 = scmp.eq.s32.totalorder 0, 0
    // Predicated region
    $region10: #{tpu_custom_call.1} parent=1 // pred_check
      %p26 = pneg %p25
    $region11: #{tpu_custom_call.1} parent=1 // pred_check_branch
      %28 = sbr.rel (%p26) target = $region13
    $region12: #{tpu_custom_call.1} parent=1 // pred_region
      %vm29 = vcmask 3072
      %30 = vst.msk [vmem:[%s1] sm:$0xf] %vm29, 0.0
      %vm31 = vcmask 27648
      %32 = vst.msk [vmem:[#allocation5] sm:$0xf] %vm31, 0.0
    $region13: #{tpu_custom_call.1} parent=1 // pred_fallthru
      _
    %v33 = vld [vmem:[#allocation2] sm:$0xff]
    %v34 = vld [vmem:[#allocation2 + $0x8] sm:$0xff]
    %v37 = vcombine.high %v33, %v33
    %v38 = vcombine.high %v34, %v34
    %vm41 = vcmask 1043456
    %v42 = vsel %vm41, %v33, 0.0
    %v43 = vsel %vm41, %v34, 0.0
    %v44 = vadd.f32 %v42, %v43
    %v45 = vsel %vm41, %v37, 0.0
    %v46 = vsel %vm41, %v38, 0.0
    %v47 = vadd.f32 %v45, %v46
    %v48 = vld [vmem:[%s1] sm:$0xf]
    %v49 = vsel %vm41, %v44, 0.0
    %v50 = vsel %vm41, %v47, 0.0
    %v51 = vadd.f32 %v49, %v50
    %52 = vadd.xlane.f32.xlu0 %v51
    %v53 = vpop.xlane.xlu0 %52
    %v54 = vadd.f32 %v48, %v53
    %vm55 = vcmask 3072
    %56 = vst.msk [vmem:[%s1] sm:$0xf] %vm55, %v54
    %57 = vmatprep.subr.mxu0 %v37
    %58 = vmatpush1.xpose.msra.mxu0 %v33
    %59 = vmatprep.subr.mxu0 0.0
    %60 = vmatpush1.xpose.msra.mxu0 0.0
    %61 = vmatprep.subr.mxu0 0.0
    %62 = vmatpush1.xpose.msra.mxu0 0.0
    %63 = vmatprep.subr.mxu0 0.0
    %64 = vmatpush1.xpose.msra.mxu0 0.0
    %65 = vmatprep.subr.mxu0 0.0
    %66 = vmatpush1.xpose.msra.mxu0 0.0
    %67 = vmatprep.subr.mxu0 0.0
    %68 = vmatpush1.xpose.msra.mxu0 0.0
    %69 = vmatprep.subr.mxu0 0.0
    %70 = vmatpush1.xpose.msra.mxu0 0.0
    %71 = vmatprep.subr.mxu0 0.0
    %72 = vmatpush1.xpose.msra.mxu0 0.0
    %73 = vmatprep.subr.mxu0 0.0
    %74 = vmatpush1.xpose.msra.mxu0 0.0
    %75 = vmatprep.subr.mxu0 0.0
    %76 = vmatpush1.xpose.msra.mxu0 0.0
    %77 = vmatprep.subr.mxu0 0.0
    %78 = vmatpush1.xpose.msra.mxu0 0.0
    %79 = vmatprep.subr.mxu0 0.0
    %80 = vmatpush1.xpose.msra.mxu0 0.0
    %81 = vmatprep.subr.mxu0 0.0
    %82 = vmatpush1.xpose.msra.mxu0 0.0
    %83 = vmatprep.subr.mxu0 0.0
    %84 = vmatpush1.xpose.msra.mxu0 0.0
    %85 = vmatprep.subr.mxu0 0.0
    %86 = vmatpush1.xpose.msra.mxu0 0.0
    %87 = vmatprep.subr.mxu0 0.0
    %88 = vmatpush1.xpose.msra.mxu0 0.0
    %89 = vmatprep.subr.mxu0 0.0
    %90 = vmatpush1.xpose.msra.mxu0 0.0
    %91 = vmatprep.subr.mxu0 0.0
    %92 = vmatpush1.xpose.msra.mxu0 0.0
    %93 = vmatprep.subr.mxu0 0.0
    %94 = vmatpush1.xpose.msra.mxu0 0.0
    %95 = vmatprep.subr.mxu0 0.0
    %96 = vmatpush1.xpose.msra.mxu0 0.0
    %97 = vmatprep.subr.mxu0 0.0
    %98 = vmatpush1.xpose.msra.mxu0 0.0
    %99 = vmatprep.subr.mxu0 0.0
    %100 = vmatpush1.xpose.msra.mxu0 0.0
    %101 = vmatprep.subr.mxu0 0.0
    %102 = vmatpush1.xpose.msra.mxu0 0.0
    %103 = vmatprep.subr.mxu0 0.0
    %104 = vmatpush1.xpose.msra.mxu0 0.0
    %105 = vmatprep.subr.mxu0 0.0
    %106 = vmatpush1.xpose.msra.mxu0 0.0
    %107 = vmatprep.subr.mxu0 0.0
    %108 = vmatpush1.xpose.msra.mxu0 0.0
    %109 = vmatprep.subr.mxu0 0.0
    %110 = vmatpush1.xpose.msra.mxu0 0.0
    %111 = vmatprep.subr.mxu0 0.0
    %112 = vmatpush1.xpose.msra.mxu0 0.0
    %113 = vmatprep.subr.mxu0 0.0
    %114 = vmatpush1.xpose.msra.mxu0 0.0
    %115 = vmatprep.subr.mxu0 0.0
    %116 = vmatpush1.xpose.msra.mxu0 0.0
    %117 = vmatprep.subr.mxu0 0.0
    %118 = vmatpush1.xpose.msra.mxu0 0.0
    %119 = vmatprep.subr.mxu0 0.0
    %120 = vmatpush1.xpose.msra.mxu0 0.0
    %121 = vmatprep.mubr.f32.mxu0 %v37
    %122 = vmatmul.mubr.f32.gmra.mrb[0].mxu0 %v33
    %v123 = vpop.f32.mrb[0].mxu0
    %v124 = vadd.f32 0.0, %v123
    %v125 = vpop.f32.mrb[0].mxu0
    %126 = vdwg.mxu0
    %127 = vmatprep.subr.mxu0 %v38
    %128 = vmatpush1.xpose.msra.mxu0 %v34
    %129 = vmatprep.subr.mxu0 0.0
    %130 = vmatpush1.xpose.msra.mxu0 0.0
    %131 = vmatprep.subr.mxu0 0.0
    %132 = vmatpush1.xpose.msra.mxu0 0.0
    %133 = vmatprep.subr.mxu0 0.0
    %134 = vmatpush1.xpose.msra.mxu0 0.0
    %135 = vmatprep.subr.mxu0 0.0
    %136 = vmatpush1.xpose.msra.mxu0 0.0
    %137 = vmatprep.subr.mxu0 0.0
    %138 = vmatpush1.xpose.msra.mxu0 0.0
    %139 = vmatprep.subr.mxu0 0.0
    %140 = vmatpush1.xpose.msra.mxu0 0.0
    %141 = vmatprep.subr.mxu0 0.0
    %142 = vmatpush1.xpose.msra.mxu0 0.0
    %143 = vmatprep.subr.mxu0 0.0
    %144 = vmatpush1.xpose.msra.mxu0 0.0
    %145 = vmatprep.subr.mxu0 0.0
    %146 = vmatpush1.xpose.msra.mxu0 0.0
    %147 = vmatprep.subr.mxu0 0.0
    %148 = vmatpush1.xpose.msra.mxu0 0.0
    %149 = vmatprep.subr.mxu0 0.0
    %150 = vmatpush1.xpose.msra.mxu0 0.0
    %151 = vmatprep.subr.mxu0 0.0
    %152 = vmatpush1.xpose.msra.mxu0 0.0
    %153 = vmatprep.subr.mxu0 0.0
    %154 = vmatpush1.xpose.msra.mxu0 0.0
    %155 = vmatprep.subr.mxu0 0.0
    %156 = vmatpush1.xpose.msra.mxu0 0.0
    %157 = vmatprep.subr.mxu0 0.0
    %158 = vmatpush1.xpose.msra.mxu0 0.0
    %159 = vmatprep.subr.mxu0 0.0
    %160 = vmatpush1.xpose.msra.mxu0 0.0
    %161 = vmatprep.subr.mxu0 0.0
    %162 = vmatpush1.xpose.msra.mxu0 0.0
    %163 = vmatprep.subr.mxu0 0.0
    %164 = vmatpush1.xpose.msra.mxu0 0.0
    %165 = vmatprep.subr.mxu0 0.0
    %166 = vmatpush1.xpose.msra.mxu0 0.0
    %167 = vmatprep.subr.mxu0 0.0
    %168 = vmatpush1.xpose.msra.mxu0 0.0
    %169 = vmatprep.subr.mxu0 0.0
    %170 = vmatpush1.xpose.msra.mxu0 0.0
    %171 = vmatprep.subr.mxu0 0.0
    %172 = vmatpush1.xpose.msra.mxu0 0.0
    %173 = vmatprep.subr.mxu0 0.0
    %174 = vmatpush1.xpose.msra.mxu0 0.0
    %175 = vmatprep.subr.mxu0 0.0
    %176 = vmatpush1.xpose.msra.mxu0 0.0
    %177 = vmatprep.subr.mxu0 0.0
    %178 = vmatpush1.xpose.msra.mxu0 0.0
    %179 = vmatprep.subr.mxu0 0.0
    %180 = vmatpush1.xpose.msra.mxu0 0.0
    %181 = vmatprep.subr.mxu0 0.0
    %182 = vmatpush1.xpose.msra.mxu0 0.0
    %183 = vmatprep.subr.mxu0 0.0
    %184 = vmatpush1.xpose.msra.mxu0 0.0
    %185 = vmatprep.subr.mxu0 0.0
    %186 = vmatpush1.xpose.msra.mxu0 0.0
    %187 = vmatprep.subr.mxu0 0.0
    %188 = vmatpush1.xpose.msra.mxu0 0.0
    %189 = vmatprep.subr.mxu0 0.0
    %190 = vmatpush1.xpose.msra.mxu0 0.0
    %191 = vmatprep.mubr.f32.mxu0 %v38
    %192 = vmatmul.mubr.f32.gmra.mrb[0].mxu0 %v34
    %v193 = vpop.f32.mrb[0].mxu0
    %v194 = vadd.f32 0.0, %v193
    %v195 = vpop.f32.mrb[0].mxu0
    %196 = vdwg.mxu0
    %v197 = vld [vmem:[#allocation5] sm:$0xf]
    %vm198 = vcmask 27648
    %v199 = vsel %vm198, %v124, 0.0
    %v200 = vsel %vm198, %v194, 0.0
    %v201 = vadd.f32 %v199, %v200
    %v202 = vadd.f32 %v197, %v201
    %203 = vst.msk [vmem:[#allocation5] sm:$0xf] %vm198, %v202
    // Predicated region
    $region14: #{tpu_custom_call.1} parent=1 // pred_check
      _
    $region15: #{tpu_custom_call.1} parent=1 // pred_check_branch
      %205 = sbr.rel (0) target = $region17
    $region16: #{tpu_custom_call.1} parent=1 // pred_region
      _
    $region17: #{tpu_custom_call.1} parent=1 // pred_fallthru
      _
    // Predicated region
    $region18: #{tpu_custom_call.1} parent=1 // pred_check
      _
    $region19: #{tpu_custom_call.1} parent=1 // pred_check_branch
      %207 = sbr.rel (0) target = $region21
    $region20: #{tpu_custom_call.1} parent=1 // pred_region
      %s209 = ssub.s32 64, 64
      %210 = vsyncadd [#allocation4], %s209
      %s212 = sshll.u32 [#allocation5], 4
      %s213 = int_to_ptr.vmem [resolvable:$true] %s212
      %215 = dma.vmem_to_hbm [thread:$0]  %s213, 64, %s2, [#allocation4]
    $region21: #{tpu_custom_call.1} parent=1 // pred_fallthru
      _
    // Predicated region
    $region22: #{tpu_custom_call.1} parent=1 // pred_check
      _
    $region23: #{tpu_custom_call.1} parent=1 // pred_check_branch
      %217 = sbr.rel (0) target = $region25
    $region24: #{tpu_custom_call.1} parent=1 // pred_region
      _
    $region25: #{tpu_custom_call.1} parent=1 // pred_fallthru
      _
    // Predicated region
    $region26: #{tpu_custom_call.1} parent=1 // pred_check
      _
    $region27: #{tpu_custom_call.1} parent=1 // pred_check_branch
      %219 = sbr.rel (0) target = $region29
    $region28: #{tpu_custom_call.1} parent=1 // pred_region
      %220 = dma.done [#allocation4], 64
    $region29: #{tpu_custom_call.1} parent=1 // pred_fallthru
      _
    %221 = vsyncpa [#allocation3], 1
    %222 = vsyncpa [#allocation4], 1

</llo_original>
